<compile_context>
chip_gen: v7x
topology: tpu7x:2x2x1
jax: 0.10.0
libtpu: 0.0.40
codegen_flags: <defaults>
</compile_context>

<pallas_src>
import jax
import jax.numpy as jnp
import numpy as np
from jax.experimental import pallas as pl
from jax.experimental.pallas import tpu as pltpu

# ----------------------------- model dimensions -----------------------------
B = 2            # batch
LATENT = 16      # latent code size
C2, C1, C_OUT = 16, 8, 4
H0 = W0 = 4      # spatial after the fc reshape
H1 = W1 = 8      # after deconv1 (stride 2)
H2 = W2 = 16     # after deconv2 (stride 2)

FEAT0 = C2 * H0 * W0      # 256
FEAT1 = C1 * H1 * W1      # 512
FEAT2 = C_OUT * H2 * W2   # 1024
# aux row layout: [bfc(256) | s1(512) | b1(512) | s2(1024) | b2(1024)] = 3328
# all slice boundaries (256, 768, 1280, 2304, 3328) are multiples of 128.
_OFF_S1 = FEAT0
_OFF_B1 = FEAT0 + FEAT1
_OFF_S2 = FEAT0 + 2 * FEAT1
_OFF_B2 = FEAT0 + 2 * FEAT1 + FEAT2
AUX_LEN = FEAT0 + 2 * FEAT1 + 2 * FEAT2


# ------------------------------ Pallas kernel --------------------------------

def _decoder_fused_kernel(z_ref, wfc_ref, aux_ref, m1_ref, m2_hbm_ref,
                          out_ref, m2_vmem, m2_sem):
    """Fused decoder: fc -> ReLU -> deconv1 -> ReLU -> deconv2.

    MXU operands are bf16 (int8 weights dequantized in VMEM), accumulation and
    all epilogues are f32 (v5e has no bf16 VPU/EUP).  Activations never leave
    VMEM; the only HBM store is the final lane-dense (B, 1024) output slab.
    """
    # Kick off the dominant weight fetch (m2, int8) immediately; it overlaps
    # with the fc + deconv1 GEMMs, dequant casts and epilogues below.
    m2_copy = pltpu.make_async_copy(m2_hbm_ref, m2_vmem, m2_sem)
    m2_copy.start()

    # Packed f32 epilogue constants (tile-aligned static slices = free views).
    bfc = aux_ref[:, 0:FEAT0]
    s1 = aux_ref[:, _OFF_S1:_OFF_B1]
    b1 = aux_ref[:, _OFF_B1:_OFF_S2]
    s2 = aux_ref[:, _OFF_S2:_OFF_B2]
    b2 = aux_ref[:, _OFF_B2:]

    # fc + bias + ReLU                                   (B, 256)
    h0 = jnp.dot(z_ref[...].astype(jnp.bfloat16), wfc_ref[...],
                 preferred_element_type=jnp.float32)
    h0 = jnp.maximum(h0 + bfc, 0.0)

    # deconv1 folded to a dense NCHW-flat linear map; int8 weights -> bf16
    # dequant for the MXU, per-column scale folded into the f32 epilogue.
    h1 = jnp.dot(h0.astype(jnp.bfloat16), m1_ref[...].astype(jnp.bfloat16),
                 preferred_element_type=jnp.float32)                  # (B, 512)
    h1 = jnp.maximum(h1 * s1 + b1, 0.0)

    # deconv2 -> reconstructed image, NCHW-flat, lane-dense (B, 1024)
    m2_copy.wait()
    out = jnp.dot(h1.astype(jnp.bfloat16), m2_vmem[...].astype(jnp.bfloat16),
                  preferred_element_type=jnp.float32)
    out_ref[...] = out * s2 + b2


# --------------------------- weight prep (one-time) ---------------------------

def _upsample_select(n_in, k=3, stride=2, pad=1, out_pad=1):
    """A[i, p, t] = 1.0 iff output position p receives input position i through
    kernel tap t of a 1-D transposed conv:  p == stride*i - pad + t."""
    n_out = (n_in - 1) * stride - 2 * pad + k + out_pad
    i = np.arange(n_in)[:, None, None]
    p = np.arange(n_out)[None, :, None]
    t = np.arange(k)[None, None, :]
    return (p == stride * i - pad + t).astype(np.float32)   # (n_in, n_out, k)


def fold_conv_transpose(wt, h_in, w_in):
    """Fold ConvTranspose2d(stride=2, padding=1, output_padding=1) with PyTorch
    weight layout wt (Cin, Cout, K, K) into a dense matrix
    M (Cin*Hin*Win, Cout*Hout*Wout) acting on NCHW-flattened activations:
        y_flat = x_flat @ M          (bit-exact in f32)
    """
    cin, cout, k, _ = wt.shape
    ah = jnp.asarray(_upsample_select(h_in, k))   # (Hin, Hout, K)
    aw = jnp.asarray(_upsample_select(w_in, k))   # (Win, Wout, K)
    m = jnp.einsum("cokl,ipk,jql->cijopq", wt, ah, aw)
    h_out, w_out = ah.shape[1], aw.shape[1]
    return m.reshape(cin * h_in * w_in, cout * h_out * w_out)


def quantize_per_column(m):
    """Symmetric per-output-column int8 quantization: m ~= q * scale."""
    amax = jnp.max(jnp.abs(m), axis=0, keepdims=True)          # (1, N)
    scale = jnp.maximum(amax, 1e-12) / 127.0
    q = jnp.clip(jnp.round(m / scale), -127.0, 127.0).astype(jnp.int8)
    return q, scale.astype(jnp.float32)


def init_params(key):
    """Deterministic synthetic weights for the deconv base model (torch layouts)."""
    k1, k2, k3, k4, k5, k6 = jax.random.split(key, 6)
    return {
        # nn.Linear(latent, C2*4*4): weight (out, in), bias (out,)
        "w_fc": 0.1 * jax.random.normal(k1, (FEAT0, LATENT), jnp.float32),
        "b_fc": 0.1 * jax.random.normal(k2, (FEAT0,), jnp.float32),
        # nn.ConvTranspose2d(C2, C1, 3, 2, 1, 1): weight (in, out, 3, 3)
        "w_dc1": 0.1 * jax.random.normal(k3, (C2, C1, 3, 3), jnp.float32),
        "b_dc1": 0.1 * jax.random.normal(k4, (C1,), jnp.float32),
        # nn.ConvTranspose2d(C1, C_OUT, 3, 2, 1, 1)
        "w_dc2": 0.1 * jax.random.normal(k5, (C1, C_OUT, 3, 3), jnp.float32),
        "b_dc2": 0.1 * jax.random.normal(k6, (C_OUT,), jnp.float32),
    }


def prepare_decoder(params):
    """One-time prep: fold deconvs into dense NCHW-flat GEMM operands, quantize
    them to int8 with per-column scales, and pack all f32 epilogue constants
    (biases + scales) into a single lane-aligned row."""
    wfc = params["w_fc"].T.astype(jnp.bfloat16)            # (latent, 256)
    m1_f = fold_conv_transpose(params["w_dc1"], H0, W0)    # (256, 512) f32
    m2_f = fold_conv_transpose(params["w_dc2"], H1, W1)    # (512, 1024) f32
    m1_q, s1 = quantize_per_column(m1_f)
    m2_q, s2 = quantize_per_column(m2_f)
    bfc = params["b_fc"].reshape(1, -1)
    b1 = jnp.repeat(params["b_dc1"], H1 * W1).reshape(1, -1)   # NCHW-flat order
    b2 = jnp.repeat(params["b_dc2"], H2 * W2).reshape(1, -1)
    aux = jnp.concatenate([bfc, s1, b1, s2, b2], axis=1).astype(jnp.float32)
    assert aux.shape == (1, AUX_LEN)
    return {"wfc": wfc, "aux": aux, "m1": m1_q, "m2": m2_q}


# --------------------------------- forward -----------------------------------

@jax.jit
def decoder_forward(z, packed):
    """Decoder.forward(z) -> rec_img of shape (B, C_OUT, 16, 16)."""
    b = z.shape[0]
    feat1, feat2 = packed["m2"].shape
    flops = 2 * b * (packed["wfc"].shape[0] * packed["wfc"].shape[1]
                     + packed["m1"].shape[0] * packed["m1"].shape[1]
                     + feat1 * feat2)
    bytes_accessed = (sum(int(np.prod(v.shape)) * v.dtype.itemsize
                          for v in packed.values())
                      + int(z.size) * 4 + b * feat2 * 4)

    rec_flat = pl.pallas_call(
        _decoder_fused_kernel,
        out_shape=jax.ShapeDtypeStruct((b, feat2), jnp.float32),
        # Grid-free call: tiny operands fully VMEM-resident; m2 stays in HBM
        # (pl.ANY) and is fetched manually so its DMA overlaps the first two
        # layers instead of serializing ahead of all compute.
        in_specs=[
            pl.BlockSpec(memory_space=pltpu.MemorySpace.VMEM),   # z (f32)
            pl.BlockSpec(memory_space=pltpu.MemorySpace.VMEM),   # wfc (bf16)
            pl.BlockSpec(memory_space=pltpu.MemorySpace.VMEM),   # aux (f32)
            pl.BlockSpec(memory_space=pltpu.MemorySpace.VMEM),   # m1 (int8)
            pl.BlockSpec(memory_space=pl.ANY),                   # m2 (int8, HBM)
        ],
        out_specs=pl.BlockSpec(memory_space=pltpu.MemorySpace.VMEM),
        scratch_shapes=[pltpu.VMEM((feat1, feat2), jnp.int8),    # m2 landing buf
                        pltpu.SemaphoreType.DMA],
        cost_estimate=pl.CostEstimate(flops=flops, transcendentals=0,
                                      bytes_accessed=bytes_accessed),
    )(z, packed["wfc"], packed["aux"], packed["m1"], packed["m2"])

    # NCHW-flat -> (B, C, H, W): pure row-major reshape, no transpose.
    return rec_flat.reshape(b, C_OUT, H2, W2)


# ------------------------- pure-JAX reference (check) -------------------------

def _conv_transpose_ref(x, wt, bias):
    """Reference ConvTranspose2d(stride=2, padding=1, output_padding=1), NCHW."""
    rhs = jnp.flip(wt, (2, 3)).transpose(1, 0, 2, 3)       # (Cout, Cin, K, K)
    y = jax.lax.conv_general_dilated(
        x, rhs, window_strides=(1, 1), padding=((1, 2), (1, 2)),
        lhs_dilation=(2, 2), rhs_dilation=(1, 1),
        dimension_numbers=("NCHW", "OIHW", "NCHW"))
    return y + bias.reshape(1, -1, 1, 1)


def decoder_forward_ref(z, params):
    b = z.shape[0]
    h = jnp.maximum(z @ params["w_fc"].T + params["b_fc"], 0.0)
    h = h.reshape(b, C2, H0, W0)
    h = jnp.maximum(_conv_transpose_ref(h, params["w_dc1"], params["b_dc1"]), 0.0)
    return _conv_transpose_ref(h, params["w_dc2"], params["b_dc2"])


# ----------------------------------- main -------------------------------------

if __name__ == "__main__":
    key = jax.random.PRNGKey(0)
    kz, kp = jax.random.split(key)
    z = jax.random.normal(kz, (B, LATENT), jnp.float32)     # latent codes
    params = init_params(kp)
    packed = prepare_decoder(params)

    rec = decoder_forward(z, packed)
    jax.block_until_ready(rec)
    assert rec.shape == (B, C_OUT, H2, W2)

    # correctness vs. pure-f32 reference (bf16 MXU operands + int8 per-column
    # weight quantization -> loose tolerance)
    ref = decoder_forward_ref(z, params)
    max_err = float(jnp.max(jnp.abs(rec - ref)))
    assert bool(jnp.allclose(rec, ref, rtol=2e-2, atol=3e-2)), (
        "max abs err = %g" % max_err)

    print("KERNEL_OK")
</pallas_src>

<mosaic_0001>
module attributes {stable_mosaic.version = 11 : i64} {
  func.func @_decoder_fused_kernel(%arg0: memref<2x16xf32, #tpu.memory_space<vmem>>, %arg1: memref<16x256xbf16, #tpu.memory_space<vmem>>, %arg2: memref<1x3328xf32, #tpu.memory_space<vmem>>, %arg3: memref<256x512xi8, #tpu.memory_space<vmem>>, %arg4: memref<512x1024xi8, #tpu.memory_space<any>>, %arg5: memref<2x1024xf32, #tpu.memory_space<vmem>>, %arg6: memref<512x1024xi8, #tpu.memory_space<vmem>>, %arg7: memref<!tpu.dma_semaphore, #tpu.memory_space<semaphore_mem>>) attributes {dimension_semantics = [], scalar_prefetch = 0 : i64, scratch_operands = 2 : i64, tpu.core_type = #tpu.core_type<tc>} {
    tpu.enqueue_dma source(%arg4 : memref<512x1024xi8, #tpu.memory_space<any>>) target(%arg6 : memref<512x1024xi8, #tpu.memory_space<vmem>>) target_semaphore(%arg7 : memref<!tpu.dma_semaphore, #tpu.memory_space<semaphore_mem>>)
    %c0 = arith.constant 0 : index
    %c0_0 = arith.constant 0 : index
    %0 = vector.load %arg2[%c0, %c0_0] : memref<1x3328xf32, #tpu.memory_space<vmem>>, vector<1x256xf32>
    %c0_1 = arith.constant 0 : index
    %c256 = arith.constant 256 : index
    %1 = vector.load %arg2[%c0_1, %c256] : memref<1x3328xf32, #tpu.memory_space<vmem>>, vector<1x512xf32>
    %c0_2 = arith.constant 0 : index
    %c768 = arith.constant 768 : index
    %2 = vector.load %arg2[%c0_2, %c768] : memref<1x3328xf32, #tpu.memory_space<vmem>>, vector<1x512xf32>
    %c0_3 = arith.constant 0 : index
    %c1280 = arith.constant 1280 : index
    %3 = vector.load %arg2[%c0_3, %c1280] : memref<1x3328xf32, #tpu.memory_space<vmem>>, vector<1x1024xf32>
    %c0_4 = arith.constant 0 : index
    %c2304 = arith.constant 2304 : index
    %4 = vector.load %arg2[%c0_4, %c2304] : memref<1x3328xf32, #tpu.memory_space<vmem>>, vector<1x1024xf32>
    %c0_5 = arith.constant 0 : index
    %c0_6 = arith.constant 0 : index
    %5 = vector.load %arg0[%c0_5, %c0_6] : memref<2x16xf32, #tpu.memory_space<vmem>>, vector<2x16xf32>
    %6 = arith.truncf %5 : vector<2x16xf32> to vector<2x16xbf16>
    %c0_7 = arith.constant 0 : index
    %c0_8 = arith.constant 0 : index
    %7 = vector.load %arg1[%c0_7, %c0_8] : memref<16x256xbf16, #tpu.memory_space<vmem>>, vector<16x256xbf16>
    %cst = arith.constant dense<0.000000e+00> : vector<2x256xf32>
    %8 = tpu.matmul %6, %7, %cst {dimension_numbers = #tpu.dot_dimension_numbers<[1], [0], [0], [1], [0, 0, 1, 1], [], []>} : vector<2x16xbf16>, vector<16x256xbf16>, vector<2x256xf32> -> vector<2x256xf32>
    %9 = vector.broadcast %0 : vector<1x256xf32> to vector<2x256xf32>
    %10 = arith.addf %8, %9 : vector<2x256xf32>
    %cst_9 = arith.constant 0.000000e+00 : f32
    %11 = vector.broadcast %cst_9 : f32 to vector<2x256xf32>
    %12 = arith.maximumf %10, %11 : vector<2x256xf32>
    %13 = arith.truncf %12 : vector<2x256xf32> to vector<2x256xbf16>
    %c0_10 = arith.constant 0 : index
    %c0_11 = arith.constant 0 : index
    %14 = vector.load %arg3[%c0_10, %c0_11] : memref<256x512xi8, #tpu.memory_space<vmem>>, vector<256x512xi8>
    %15 = arith.sitofp %14 : vector<256x512xi8> to vector<256x512xbf16>
    %cst_12 = arith.constant dense<0.000000e+00> : vector<2x512xf32>
    %16 = tpu.matmul %13, %15, %cst_12 {dimension_numbers = #tpu.dot_dimension_numbers<[1], [0], [0], [1], [0, 0, 1, 1], [], []>} : vector<2x256xbf16>, vector<256x512xbf16>, vector<2x512xf32> -> vector<2x512xf32>
    %17 = vector.broadcast %1 : vector<1x512xf32> to vector<2x512xf32>
    %18 = arith.mulf %16, %17 : vector<2x512xf32>
    %19 = vector.broadcast %2 : vector<1x512xf32> to vector<2x512xf32>
    %20 = arith.addf %18, %19 : vector<2x512xf32>
    %cst_13 = arith.constant 0.000000e+00 : f32
    %21 = vector.broadcast %cst_13 : f32 to vector<2x512xf32>
    %22 = arith.maximumf %20, %21 : vector<2x512xf32>
    tpu.wait_dma2 semaphore(%arg7 : memref<!tpu.dma_semaphore, #tpu.memory_space<semaphore_mem>>) src(%arg4 : memref<512x1024xi8, #tpu.memory_space<any>>) dst(%arg6 : memref<512x1024xi8, #tpu.memory_space<vmem>>)
    %23 = arith.truncf %22 : vector<2x512xf32> to vector<2x512xbf16>
    %c0_14 = arith.constant 0 : index
    %c0_15 = arith.constant 0 : index
    %24 = vector.load %arg6[%c0_14, %c0_15] : memref<512x1024xi8, #tpu.memory_space<vmem>>, vector<512x1024xi8>
    %25 = arith.sitofp %24 : vector<512x1024xi8> to vector<512x1024xbf16>
    %cst_16 = arith.constant dense<0.000000e+00> : vector<2x1024xf32>
    %26 = tpu.matmul %23, %25, %cst_16 {dimension_numbers = #tpu.dot_dimension_numbers<[1], [0], [0], [1], [0, 0, 1, 1], [], []>} : vector<2x512xbf16>, vector<512x1024xbf16>, vector<2x1024xf32> -> vector<2x1024xf32>
    %27 = vector.broadcast %3 : vector<1x1024xf32> to vector<2x1024xf32>
    %28 = arith.mulf %26, %27 : vector<2x1024xf32>
    %29 = vector.broadcast %4 : vector<1x1024xf32> to vector<2x1024xf32>
    %30 = arith.addf %28, %29 : vector<2x1024xf32>
    %c0_17 = arith.constant 0 : index
    %c0_18 = arith.constant 0 : index
    %31 = vector.load %arg5[%c0_17, %c0_18] : memref<2x1024xf32, #tpu.memory_space<vmem>>, vector<2x1024xf32>
    tpu.vector_store %arg5[%c0_17, %c0_18], %30 {strides = array<i32>} : memref<2x1024xf32, #tpu.memory_space<vmem>>, vector<2x1024xf32>,
    return
  }
}

</mosaic_0001>

<llo_original>
// kernel: decoder_forward.1
$region0: #{decoder_forward.1}
  #allocation0 [shape = 'u32[]', space=smem, size = 0x4, offset = 0x4, fixed_abs, tag = 'smem constant byte address 0x4 - core index']
  #allocation1 [shape = 'u32[144,128]{1,0:T(1,128)}', space=vmem, size = 0x12000, scoped, tag = 'internal scratch']
  #allocation2 [shape = 's8[512,1024]{1,0:T(32,128)(4,1)}', space=vmem, size = 0x80000, scoped, tag = 'scratch operand']
  #allocation3 [shape = 's32[1]{0}', space=sflag, size = 0x4, scoped, tag = 'scratch operand']
  #allocation11 [shape = 's32[]', space=sflag, size = 0x4, offset = 0, fixed_abs, tag = 'sflag constant byte address 0x0 - dummy sync flag']
  #allocation12 [shape = 's32[]', space=sflag, size = 0x4, offset = 0, fixed_abs, tag = 'sflag constant byte address 0x0 - dummy sync flag']
  #allocation13 [shape = 'u32[]', space=smem, size = 0x4, offset = 0x44, fixed_abs, tag = 'smem constant byte address 0x44 - assertion arg 0']
  #allocation14 [shape = 'u32[]', space=smem, size = 0x4, offset = 0x48, fixed_abs, tag = 'smem constant byte address 0x48 - assertion arg 1']
  %s0 = inlined_call_operand.hbm [shape: f32[2,16], index: 0, kind: input, shape index: {}]
  %s1 = inlined_call_operand.hbm [shape: bf16[16,256], index: 1, kind: input, shape index: {}]
  %s2 = inlined_call_operand.hbm [shape: f32[1,3328], index: 2, kind: input, shape index: {}]
  %s3 = inlined_call_operand.hbm [shape: s8[256,512], index: 3, kind: input, shape index: {}]
  %s4 = inlined_call_operand.hbm [shape: s8[512,1024], index: 4, kind: input, shape index: {}]
  %s5 = inlined_call_operand.vmem [shape: f32[2,1024], index: 5, kind: output, shape index: {}]
  %s6 = sld [smem:[#allocation0]]
  $region46: #{decoder_forward.1} parent=0
    _
  %s8 = ssub.s32 1, %s6
  %s9 = scalar_select 0, %s8, %s6
  $region1: #{decoder_forward.1} parent=0
    #allocation4 [shape = 'u8[1024]{0}', space=vmem, size = 0x400, scoped, tag = 'input window, operand 0, single buffered']
    #allocation5 [shape = 's32[1]{0}', space=sflag, size = 0x4, scoped, tag = 'scoped memory for decoder_forward.1']
    #allocation6 [shape = 'u8[8192]{0}', space=vmem, size = 0x2000, scoped, tag = 'input window, operand 1, single buffered']
    #allocation7 [shape = 's32[1]{0}', space=sflag, size = 0x4, scoped, tag = 'scoped memory for decoder_forward.1']
    #allocation8 [shape = 'u8[13312]{0}', space=vmem, size = 0x3400, scoped, tag = 'input window, operand 2, single buffered']
    #allocation9 [shape = 'u8[131072]{0}', space=vmem, size = 0x20000, scoped, tag = 'input window, operand 3, single buffered']
    #allocation10 [shape = 's32[1]{0}', space=sflag, size = 0x4, scoped, tag = 'scoped memory for decoder_forward.1']
    %10 = vsyncpa [#allocation5], 0
    %11 = vsyncpa [#allocation7], 0
    %12 = vsyncpa [#allocation10], 0
    // Predicated region
    $region2: #{decoder_forward.1} parent=1 // pred_check
      _
    $region3: #{decoder_forward.1} parent=1 // pred_check_branch
      %14 = sbr.rel (0) target = $region5
    $region4: #{decoder_forward.1} parent=1 // pred_region
      %s16 = ssub.s32 32, 32
      %17 = vsyncadd [#allocation5], %s16
      %s19 = sshll.u32 [#allocation4], 4
      %s20 = int_to_ptr.vmem [resolvable:$true] %s19
      %22 = dma.hbm_to_vmem [thread:$0]  %s0, 32, %s20, [#allocation5]
    $region5: #{decoder_forward.1} parent=1 // pred_fallthru
      _
    // Predicated region
    $region6: #{decoder_forward.1} parent=1 // pred_check
      _
    $region7: #{decoder_forward.1} parent=1 // pred_check_branch
      %24 = sbr.rel (0) target = $region9
    $region8: #{decoder_forward.1} parent=1 // pred_region
      %s26 = ssub.s32 256, 256
      %27 = vsyncadd [#allocation7], %s26
      %s28 = sshll.u32 [#allocation6], 4
      %s29 = int_to_ptr.vmem [resolvable:$true] %s28
      %34 = dma.hbm_to_vmem [thread:$0]  %s1, 256, %s29, [#allocation7], 128, 128, 8
    $region9: #{decoder_forward.1} parent=1 // pred_fallthru
      _
    // Predicated region
    $region10: #{decoder_forward.1} parent=1 // pred_check
      _
    $region11: #{decoder_forward.1} parent=1 // pred_check_branch
      %36 = sbr.rel (0) target = $region13
    $region12: #{decoder_forward.1} parent=1 // pred_region
      %s38 = ssub.s32 416, 416
      %39 = vsyncadd [#allocation7], %s38
      %s41 = sshll.u32 [#allocation8], 4
      %s42 = int_to_ptr.vmem [resolvable:$true] %s41
      %44 = dma.hbm_to_vmem [thread:$0]  %s2, 416, %s42, [#allocation7]
    $region13: #{decoder_forward.1} parent=1 // pred_fallthru
      _
    // Predicated region
    $region14: #{decoder_forward.1} parent=1 // pred_check
      _
    $region15: #{decoder_forward.1} parent=1 // pred_check_branch
      %46 = sbr.rel (0) target = $region17
    $region16: #{decoder_forward.1} parent=1 // pred_region
      %s48 = ssub.s32 4096, 4096
      %49 = vsyncadd [#allocation10], %s48
      %s50 = sshll.u32 [#allocation9], 4
      %s51 = int_to_ptr.vmem [resolvable:$true] %s50
      %56 = dma.hbm_to_vmem [thread:$0]  %s3, 4096, %s51, [#allocation10], 512, 512, 32
    $region17: #{decoder_forward.1} parent=1 // pred_fallthru
      _
    // Predicated region
    $region18: #{decoder_forward.1} parent=1 // pred_check
      _
    $region19: #{decoder_forward.1} parent=1 // pred_check_branch
      %58 = sbr.rel (0) target = $region21
    $region20: #{decoder_forward.1} parent=1 // pred_region
      %59 = dma.done [#allocation5], 32
    $region21: #{decoder_forward.1} parent=1 // pred_fallthru
      _
    // Predicated region
    $region22: #{decoder_forward.1} parent=1 // pred_check
      _
    $region23: #{decoder_forward.1} parent=1 // pred_check_branch
      %61 = sbr.rel (0) target = $region25
    $region24: #{decoder_forward.1} parent=1 // pred_region
      %62 = dma.done [#allocation7], 256
    $region25: #{decoder_forward.1} parent=1 // pred_fallthru
      _
    // Predicated region
    $region26: #{decoder_forward.1} parent=1 // pred_check
      _
    $region27: #{decoder_forward.1} parent=1 // pred_check_branch
      %64 = sbr.rel (0) target = $region29
    $region28: #{decoder_forward.1} parent=1 // pred_region
      %65 = dma.done [#allocation7], 416
    $region29: #{decoder_forward.1} parent=1 // pred_fallthru
      _
    // Predicated region
    $region30: #{decoder_forward.1} parent=1 // pred_check
      _
    $region31: #{decoder_forward.1} parent=1 // pred_check_branch
      %67 = sbr.rel (0) target = $region33
    $region32: #{decoder_forward.1} parent=1 // pred_region
      %68 = dma.done [#allocation10], 4096
    $region33: #{decoder_forward.1} parent=1 // pred_fallthru
      _
    // Predicated region
    $region34: #{decoder_forward.1} parent=1 // pred_check
      _
    $region35: #{decoder_forward.1} parent=1 // pred_check_branch
      %71 = sbr.rel target = $region37
    $region36: #{decoder_forward.1} parent=1 // pred_region
      %72 = sst [smem:[#allocation13]] [#allocation12]
      %73 = sst [smem:[#allocation14]] [#allocation11]
    $region37: #{decoder_forward.1} parent=1 // pred_fallthru
      _
    %75 = shalt.err (0)
    %s77 = sshll.u32 [#allocation2], 4
    %s78 = int_to_ptr.vmem [resolvable:$true] %s77
    %80 = dma.hbm_to_vmem [thread:$0]  %s4, 16384, %s78, [#allocation3]
    %v81 = vld [vmem:[#allocation8] sm:$0x3]
    %v82 = vld [vmem:[#allocation8 + $0x2] sm:$0xf]
    %v83 = vld [vmem:[#allocation8 + $0x6] sm:$0xf]
    %v84 = vld [vmem:[#allocation8 + $0xa] sm:$0xff]
    %v85 = vld [vmem:[#allocation8 + $0x12] sm:$0xff]
    %v86 = vld [vmem:[#allocation4] sm:$0x3]
    %v87 = vpack.c.bf16 %v86, %v86
    %v88 = vld [vmem:[#allocation6] sm:$0xff]
    %v89 = vld [vmem:[#allocation6 + $0x8] sm:$0xff]
    %v91 = vlaneseq
    %v92 = vshrl.u32 %v91, 7
    %v93 = vsub.s32 0, %v92
    %v94 = vrot.slane %v81, %v93
    %v95 = vlaneseq
    %v96 = vshrl.u32 %v95, 7
    %v97 = vsub.s32 1, %v96
    %v98 = vrot.slane %v81, %v97
    %v103 = vunpack.c.l.b16 %v88
    %v104 = vunpack.c.h.b16 %v88
    %v105 = vunpack.c.l.b16 %v89
    %v106 = vunpack.c.h.b16 %v89
    %v107 = vpack.c.b16 %v105, %v103
    %v108 = vpack.c.b16 %v106, %v104
    %vm111 = vcmask 130048
    %v113 = vsel %vm111, %v87, 0
    %115 = vmatprep.subr.bf16.mxu0 %v108
    %116 = vmatpush1.bf16.msra.mxu0 %v107
    %117 = vmatprep.subr.bf16.mxu0 0
    %118 = vmatpush1.bf16.msra.mxu0 0
    %119 = vmatprep.subr.bf16.mxu0 0
    %120 = vmatpush1.bf16.msra.mxu0 0
    %121 = vmatprep.subr.bf16.mxu0 0
    %122 = vmatpush1.bf16.msra.mxu0 0
    %123 = vmatprep.subr.bf16.mxu0 0
    %124 = vmatpush1.bf16.msra.mxu0 0
    %125 = vmatprep.subr.bf16.mxu0 0
    %126 = vmatpush1.bf16.msra.mxu0 0
    %127 = vmatprep.subr.bf16.mxu0 0
    %128 = vmatpush1.bf16.msra.mxu0 0
    %129 = vmatprep.subr.bf16.mxu0 0
    %130 = vmatpush1.bf16.msra.mxu0 0
    %131 = vmatprep.subr.bf16.mxu0 0
    %132 = vmatpush1.bf16.msra.mxu0 0
    %133 = vmatprep.subr.bf16.mxu0 0
    %134 = vmatpush1.bf16.msra.mxu0 0
    %135 = vmatprep.subr.bf16.mxu0 0
    %136 = vmatpush1.bf16.msra.mxu0 0
    %137 = vmatprep.subr.bf16.mxu0 0
    %138 = vmatpush1.bf16.msra.mxu0 0
    %139 = vmatprep.subr.bf16.mxu0 0
    %140 = vmatpush1.bf16.msra.mxu0 0
    %141 = vmatprep.subr.bf16.mxu0 0
    %142 = vmatpush1.bf16.msra.mxu0 0
    %143 = vmatprep.subr.bf16.mxu0 0
    %144 = vmatpush1.bf16.msra.mxu0 0
    %145 = vmatprep.subr.bf16.mxu0 0
    %146 = vmatpush1.bf16.msra.mxu0 0
    %147 = vmatprep.mubr.bf16.mxu0 0
    %148 = vmatmul.mubr.bf16.gmra.mrb[0].mxu0 %v113
    %v149 = vpop.f32.mrb[0].mxu0
    %v150 = vadd.f32 %v94, %v149
    %v151 = vpop.f32.mrb[0].mxu0
    %v152 = vadd.f32 %v98, %v151
    %v153 = vpop.f32.mrb[0].mxu0
    %v154 = vpop.f32.mrb[0].mxu0
    %155 = vdwg.mxu0
    %v156 = vmax.f32 %v150, 0.0
    %v157 = vmax.f32 %v152, 0.0
    %v158 = vpack.c.bf16 %v156, %v156
    %v159 = vpack.c.bf16 %v157, %v157
    %v160 = vld [vmem:[#allocation9] sm:$0xff]
    %v161 = vld [vmem:[#allocation9 + $0x8] sm:$0xff]
    %v162 = vld [vmem:[#allocation9 + $0x10] sm:$0xff]
    %v163 = vld [vmem:[#allocation9 + $0x18] sm:$0xff]
    %v164 = vld [vmem:[#allocation9 + $0x20] sm:$0xff]
    %v165 = vld [vmem:[#allocation9 + $0x28] sm:$0xff]
    %v166 = vld [vmem:[#allocation9 + $0x30] sm:$0xff]
    %v167 = vld [vmem:[#allocation9 + $0x38] sm:$0xff]
    %v168 = vld [vmem:[#allocation9 + $0x40] sm:$0xff]
    %v169 = vld [vmem:[#allocation9 + $0x48] sm:$0xff]
    %v170 = vld [vmem:[#allocation9 + $0x50] sm:$0xff]
    %v171 = vld [vmem:[#allocation9 + $0x58] sm:$0xff]
    %v172 = vld [vmem:[#allocation9 + $0x60] sm:$0xff]
    %v173 = vld [vmem:[#allocation9 + $0x68] sm:$0xff]
    %v174 = vld [vmem:[#allocation9 + $0x70] sm:$0xff]
    %v175 = vld [vmem:[#allocation9 + $0x78] sm:$0xff]
    %v176 = vld [vmem:[#allocation9 + $0x80] sm:$0xff]
    %v177 = vld [vmem:[#allocation9 + $0x88] sm:$0xff]
    %v178 = vld [vmem:[#allocation9 + $0x90] sm:$0xff]
    %v179 = vld [vmem:[#allocation9 + $0x98] sm:$0xff]
    %v180 = vld [vmem:[#allocation9 + $0xa0] sm:$0xff]
    %v181 = vld [vmem:[#allocation9 + $0xa8] sm:$0xff]
    %v182 = vld [vmem:[#allocation9 + $0xb0] sm:$0xff]
    %v183 = vld [vmem:[#allocation9 + $0xb8] sm:$0xff]
    %v184 = vld [vmem:[#allocation9 + $0xc0] sm:$0xff]
    %v185 = vld [vmem:[#allocation9 + $0xc8] sm:$0xff]
    %v186 = vld [vmem:[#allocation9 + $0xd0] sm:$0xff]
    %v187 = vld [vmem:[#allocation9 + $0xd8] sm:$0xff]
    %v188 = vld [vmem:[#allocation9 + $0xe0] sm:$0xff]
    %v189 = vld [vmem:[#allocation9 + $0xe8] sm:$0xff]
    %v190 = vld [vmem:[#allocation9 + $0xf0] sm:$0xff]
    %v191 = vld [vmem:[#allocation9 + $0xf8] sm:$0xff]
    %v192 = vunpack.c.l.s8.bf16 %v160
    %v193 = vunpack.c.l.s8.bf16 %v161
    %v194 = vunpack.c.l.s8.bf16 %v162
    %v195 = vunpack.c.l.s8.bf16 %v163
    %v196 = vunpack.c.h.s8.bf16 %v160
    %v197 = vunpack.c.h.s8.bf16 %v161
    %v198 = vunpack.c.h.s8.bf16 %v162
    %v199 = vunpack.c.h.s8.bf16 %v163
    %v200 = vunpack.c.l.s8.bf16 %v164
    %v201 = vunpack.c.l.s8.bf16 %v165
    %v202 = vunpack.c.l.s8.bf16 %v166
    %v203 = vunpack.c.l.s8.bf16 %v167
    %v204 = vunpack.c.h.s8.bf16 %v164
    %v205 = vunpack.c.h.s8.bf16 %v165
    %v206 = vunpack.c.h.s8.bf16 %v166
    %v207 = vunpack.c.h.s8.bf16 %v167
    %v208 = vunpack.c.l.s8.bf16 %v168
    %v209 = vunpack.c.l.s8.bf16 %v169
    %v210 = vunpack.c.l.s8.bf16 %v170
    %v211 = vunpack.c.l.s8.bf16 %v171
    %v212 = vunpack.c.h.s8.bf16 %v168
    %v213 = vunpack.c.h.s8.bf16 %v169
    %v214 = vunpack.c.h.s8.bf16 %v170
    %v215 = vunpack.c.h.s8.bf16 %v171
    %v216 = vunpack.c.l.s8.bf16 %v172
    %v217 = vunpack.c.l.s8.bf16 %v173
    %v218 = vunpack.c.l.s8.bf16 %v174
    %v219 = vunpack.c.l.s8.bf16 %v175
    %v220 = vunpack.c.h.s8.bf16 %v172
    %v221 = vunpack.c.h.s8.bf16 %v173
    %v222 = vunpack.c.h.s8.bf16 %v174
    %v223 = vunpack.c.h.s8.bf16 %v175
    %v224 = vunpack.c.l.s8.bf16 %v176
    %v225 = vunpack.c.l.s8.bf16 %v177
    %v226 = vunpack.c.l.s8.bf16 %v178
    %v227 = vunpack.c.l.s8.bf16 %v179
    %v228 = vunpack.c.h.s8.bf16 %v176
    %v229 = vunpack.c.h.s8.bf16 %v177
    %v230 = vunpack.c.h.s8.bf16 %v178
    %v231 = vunpack.c.h.s8.bf16 %v179
    %v232 = vunpack.c.l.s8.bf16 %v180
    %v233 = vunpack.c.l.s8.bf16 %v181
    %v234 = vunpack.c.l.s8.bf16 %v182
    %v235 = vunpack.c.l.s8.bf16 %v183
    %v236 = vunpack.c.h.s8.bf16 %v180
    %v237 = vunpack.c.h.s8.bf16 %v181
    %v238 = vunpack.c.h.s8.bf16 %v182
    %v239 = vunpack.c.h.s8.bf16 %v183
    %v240 = vunpack.c.l.s8.bf16 %v184
    %v241 = vunpack.c.l.s8.bf16 %v185
    %v242 = vunpack.c.l.s8.bf16 %v186
    %v243 = vunpack.c.l.s8.bf16 %v187
    %v244 = vunpack.c.h.s8.bf16 %v184
    %v245 = vunpack.c.h.s8.bf16 %v185
    %v246 = vunpack.c.h.s8.bf16 %v186
    %v247 = vunpack.c.h.s8.bf16 %v187
    %v248 = vunpack.c.l.s8.bf16 %v188
    %v249 = vunpack.c.l.s8.bf16 %v189
    %v250 = vunpack.c.l.s8.bf16 %v190
    %v251 = vunpack.c.l.s8.bf16 %v191
    %v252 = vunpack.c.h.s8.bf16 %v188
    %v253 = vunpack.c.h.s8.bf16 %v189
    %v254 = vunpack.c.h.s8.bf16 %v190
    %v255 = vunpack.c.h.s8.bf16 %v191
    %256 = vmatprep.subr.bf16.mxu0 %v193
    %257 = vmatpush1.bf16.msra.mxu0 %v192
    %258 = vmatprep.subr.bf16.mxu0 %v197
    %259 = vmatpush1.bf16.msra.mxu0 %v196
    %260 = vmatprep.subr.bf16.mxu0 %v201
    %261 = vmatpush1.bf16.msra.mxu0 %v200
    %262 = vmatprep.subr.bf16.mxu0 %v205
    %263 = vmatpush1.bf16.msra.mxu0 %v204
    %264 = vmatprep.subr.bf16.mxu0 %v209
    %265 = vmatpush1.bf16.msra.mxu0 %v208
    %266 = vmatprep.subr.bf16.mxu0 %v213
    %267 = vmatpush1.bf16.msra.mxu0 %v212
    %268 = vmatprep.subr.bf16.mxu0 %v217
    %269 = vmatpush1.bf16.msra.mxu0 %v216
    %270 = vmatprep.subr.bf16.mxu0 %v221
    %271 = vmatpush1.bf16.msra.mxu0 %v220
    %272 = vmatprep.subr.bf16.mxu0 %v225
    %273 = vmatpush1.bf16.msra.mxu0 %v224
    %274 = vmatprep.subr.bf16.mxu0 %v229
    %275 = vmatpush1.bf16.msra.mxu0 %v228
    %276 = vmatprep.subr.bf16.mxu0 %v233
    %277 = vmatpush1.bf16.msra.mxu0 %v232
    %278 = vmatprep.subr.bf16.mxu0 %v237
    %279 = vmatpush1.bf16.msra.mxu0 %v236
    %280 = vmatprep.subr.bf16.mxu0 %v241
    %281 = vmatpush1.bf16.msra.mxu0 %v240
    %282 = vmatprep.subr.bf16.mxu0 %v245
    %283 = vmatpush1.bf16.msra.mxu0 %v244
    %284 = vmatprep.subr.bf16.mxu0 %v249
    %285 = vmatpush1.bf16.msra.mxu0 %v248
    %286 = vmatprep.subr.bf16.mxu0 %v253
    %287 = vmatpush1.bf16.msra.mxu0 %v252
    %288 = vmatprep.mubr.bf16.mxu0 %v159
    %289 = vmatmul.mubr.bf16.gmra.mrb[0].mxu0 %v158
    %v290 = vpop.f32.mrb[0].mxu0
    %v291 = vadd.f32 0.0, %v290
    %v292 = vpop.f32.mrb[0].mxu0
    %v293 = vadd.f32 0.0, %v292
    %v294 = vpop.f32.mrb[0].mxu0
    %v295 = vpop.f32.mrb[0].mxu0
    %296 = vdwg.mxu0
    %297 = vmatprep.subr.bf16.mxu0 %v195
    %298 = vmatpush1.bf16.msra.mxu0 %v194
    %299 = vmatprep.subr.bf16.mxu0 %v199
    %300 = vmatpush1.bf16.msra.mxu0 %v198
    %301 = vmatprep.subr.bf16.mxu0 %v203
    %302 = vmatpush1.bf16.msra.mxu0 %v202
    %303 = vmatprep.subr.bf16.mxu0 %v207
    %304 = vmatpush1.bf16.msra.mxu0 %v206
    %305 = vmatprep.subr.bf16.mxu0 %v211
    %306 = vmatpush1.bf16.msra.mxu0 %v210
    %307 = vmatprep.subr.bf16.mxu0 %v215
    %308 = vmatpush1.bf16.msra.mxu0 %v214
    %309 = vmatprep.subr.bf16.mxu0 %v219
    %310 = vmatpush1.bf16.msra.mxu0 %v218
    %311 = vmatprep.subr.bf16.mxu0 %v223
    %312 = vmatpush1.bf16.msra.mxu0 %v222
    %313 = vmatprep.subr.bf16.mxu0 %v227
    %314 = vmatpush1.bf16.msra.mxu0 %v226
    %315 = vmatprep.subr.bf16.mxu0 %v231
    %316 = vmatpush1.bf16.msra.mxu0 %v230
    %317 = vmatprep.subr.bf16.mxu0 %v235
    %318 = vmatpush1.bf16.msra.mxu0 %v234
    %319 = vmatprep.subr.bf16.mxu0 %v239
    %320 = vmatpush1.bf16.msra.mxu0 %v238
    %321 = vmatprep.subr.bf16.mxu0 %v243
    %322 = vmatpush1.bf16.msra.mxu0 %v242
    %323 = vmatprep.subr.bf16.mxu0 %v247
    %324 = vmatpush1.bf16.msra.mxu0 %v246
    %325 = vmatprep.subr.bf16.mxu0 %v251
    %326 = vmatpush1.bf16.msra.mxu0 %v250
    %327 = vmatprep.subr.bf16.mxu0 %v255
    %328 = vmatpush1.bf16.msra.mxu0 %v254
    %329 = vmatprep.mubr.bf16.mxu0 %v159
    %330 = vmatmul.mubr.bf16.gmra.mrb[0].mxu0 %v158
    %v331 = vpop.f32.mrb[0].mxu0
    %v332 = vadd.f32 0.0, %v331
    %v333 = vpop.f32.mrb[0].mxu0
    %v334 = vadd.f32 0.0, %v333
    %v335 = vpop.f32.mrb[0].mxu0
    %v336 = vpop.f32.mrb[0].mxu0
    %337 = vdwg.mxu0
    %v339 = vlaneseq
    %v340 = vshrl.u32 %v339, 7
    %v341 = vsub.s32 0, %v340
    %v342 = vrot.slane %v82, %v341
    %v343 = vlaneseq
    %v344 = vshrl.u32 %v343, 7
    %v345 = vsub.s32 1, %v344
    %v346 = vrot.slane %v82, %v345
    %v347 = vlaneseq
    %v348 = vshrl.u32 %v347, 7
    %v349 = vsub.s32 2, %v348
    %v350 = vrot.slane %v82, %v349
    %v351 = vlaneseq
    %v352 = vshrl.u32 %v351, 7
    %v353 = vsub.s32 3, %v352
    %v354 = vrot.slane %v82, %v353
    %v359 = vmul.f32 %v291, %v342
    %v360 = vmul.f32 %v293, %v346
    %v361 = vmul.f32 %v332, %v350
    %v362 = vmul.f32 %v334, %v354
    %v364 = vlaneseq
    %v365 = vshrl.u32 %v364, 7
    %v366 = vsub.s32 0, %v365
    %v367 = vrot.slane %v83, %v366
    %v368 = vlaneseq
    %v369 = vshrl.u32 %v368, 7
    %v370 = vsub.s32 1, %v369
    %v371 = vrot.slane %v83, %v370
    %v372 = vlaneseq
    %v373 = vshrl.u32 %v372, 7
    %v374 = vsub.s32 2, %v373
    %v375 = vrot.slane %v83, %v374
    %v376 = vlaneseq
    %v377 = vshrl.u32 %v376, 7
    %v378 = vsub.s32 3, %v377
    %v379 = vrot.slane %v83, %v378
    %v384 = vadd.f32 %v359, %v367
    %v385 = vadd.f32 %v360, %v371
    %v386 = vadd.f32 %v361, %v375
    %v387 = vadd.f32 %v362, %v379
    %v388 = vmax.f32 %v384, 0.0
    %v389 = vmax.f32 %v385, 0.0
    %v390 = vmax.f32 %v386, 0.0
    %v391 = vmax.f32 %v387, 0.0
    %s392 = smul.u32 2, 64
    %s393 = smul.u32 %s392, 8
    %s394 = sshll.u32 %s393, 4
    %395 = dma.done [#allocation3], %s394
    %v396 = vpack.c.bf16 %v388, %v388
    %v397 = vpack.c.bf16 %v389, %v389
    %v398 = vpack.c.bf16 %v390, %v390
    %v399 = vpack.c.bf16 %v391, %v391
    %v400 = vld [vmem:[#allocation2] sm:$0xff]
    %v401 = vld [vmem:[#allocation2 + $0x8] sm:$0xff]
    %v402 = vld [vmem:[#allocation2 + $0x10] sm:$0xff]
    %v403 = vld [vmem:[#allocation2 + $0x18] sm:$0xff]
    %v404 = vld [vmem:[#allocation2 + $0x20] sm:$0xff]
    %v405 = vld [vmem:[#allocation2 + $0x28] sm:$0xff]
    %v406 = vld [vmem:[#allocation2 + $0x30] sm:$0xff]
    %v407 = vld [vmem:[#allocation2 + $0x38] sm:$0xff]
    %v408 = vld [vmem:[#allocation2 + $0x40] sm:$0xff]
    %v409 = vld [vmem:[#allocation2 + $0x48] sm:$0xff]
    %v410 = vld [vmem:[#allocation2 + $0x50] sm:$0xff]
    %v411 = vld [vmem:[#allocation2 + $0x58] sm:$0xff]
    %v412 = vld [vmem:[#allocation2 + $0x60] sm:$0xff]
    %v413 = vld [vmem:[#allocation2 + $0x68] sm:$0xff]
    %v414 = vld [vmem:[#allocation2 + $0x70] sm:$0xff]
    %v415 = vld [vmem:[#allocation2 + $0x78] sm:$0xff]
    %v416 = vld [vmem:[#allocation2 + $0x80] sm:$0xff]
    %v417 = vld [vmem:[#allocation2 + $0x88] sm:$0xff]
    %v418 = vld [vmem:[#allocation2 + $0x90] sm:$0xff]
    %v419 = vld [vmem:[#allocation2 + $0x98] sm:$0xff]
    %v420 = vld [vmem:[#allocation2 + $0xa0] sm:$0xff]
    %v421 = vld [vmem:[#allocation2 + $0xa8] sm:$0xff]
    %v422 = vld [vmem:[#allocation2 + $0xb0] sm:$0xff]
    %v423 = vld [vmem:[#allocation2 + $0xb8] sm:$0xff]
    %v424 = vld [vmem:[#allocation2 + $0xc0] sm:$0xff]
    %v425 = vld [vmem:[#allocation2 + $0xc8] sm:$0xff]
    %v426 = vld [vmem:[#allocation2 + $0xd0] sm:$0xff]
    %v427 = vld [vmem:[#allocation2 + $0xd8] sm:$0xff]
    %v428 = vld [vmem:[#allocation2 + $0xe0] sm:$0xff]
    %v429 = vld [vmem:[#allocation2 + $0xe8] sm:$0xff]
    %v430 = vld [vmem:[#allocation2 + $0xf0] sm:$0xff]
    %v431 = vld [vmem:[#allocation2 + $0xf8] sm:$0xff]
    %v432 = vld [vmem:[#allocation2 + $0x100] sm:$0xff]
    %v433 = vld [vmem:[#allocation2 + $0x108] sm:$0xff]
    %v434 = vld [vmem:[#allocation2 + $0x110] sm:$0xff]
    %v435 = vld [vmem:[#allocation2 + $0x118] sm:$0xff]
    %v436 = vld [vmem:[#allocation2 + $0x120] sm:$0xff]
    %v437 = vld [vmem:[#allocation2 + $0x128] sm:$0xff]
    %v438 = vld [vmem:[#allocation2 + $0x130] sm:$0xff]
    %v439 = vld [vmem:[#allocation2 + $0x138] sm:$0xff]
    %v440 = vld [vmem:[#allocation2 + $0x140] sm:$0xff]
    %v441 = vld [vmem:[#allocation2 + $0x148] sm:$0xff]
    %v442 = vld [vmem:[#allocation2 + $0x150] sm:$0xff]
    %v443 = vld [vmem:[#allocation2 + $0x158] sm:$0xff]
    %v444 = vld [vmem:[#allocation2 + $0x160] sm:$0xff]
    %v445 = vld [vmem:[#allocation2 + $0x168] sm:$0xff]
    %v446 = vld [vmem:[#allocation2 + $0x170] sm:$0xff]
    %v447 = vld [vmem:[#allocation2 + $0x178] sm:$0xff]
    %v448 = vld [vmem:[#allocation2 + $0x180] sm:$0xff]
    %v449 = vld [vmem:[#allocation2 + $0x188] sm:$0xff]
    %v450 = vld [vmem:[#allocation2 + $0x190] sm:$0xff]
    %v451 = vld [vmem:[#allocation2 + $0x198] sm:$0xff]
    %v452 = vld [vmem:[#allocation2 + $0x1a0] sm:$0xff]
    %v453 = vld [vmem:[#allocation2 + $0x1a8] sm:$0xff]
    %v454 = vld [vmem:[#allocation2 + $0x1b0] sm:$0xff]
    %v455 = vld [vmem:[#allocation2 + $0x1b8] sm:$0xff]
    %v456 = vld [vmem:[#allocation2 + $0x1c0] sm:$0xff]
    %v457 = vld [vmem:[#allocation2 + $0x1c8] sm:$0xff]
    %v458 = vld [vmem:[#allocation2 + $0x1d0] sm:$0xff]
    %v459 = vld [vmem:[#allocation2 + $0x1d8] sm:$0xff]
    %v460 = vld [vmem:[#allocation2 + $0x1e0] sm:$0xff]
    %v461 = vld [vmem:[#allocation2 + $0x1e8] sm:$0xff]
    %v462 = vld [vmem:[#allocation2 + $0x1f0] sm:$0xff]
    %v463 = vld [vmem:[#allocation2 + $0x1f8] sm:$0xff]
    %v464 = vld [vmem:[#allocation2 + $0x200] sm:$0xff]
    %v465 = vld [vmem:[#allocation2 + $0x208] sm:$0xff]
    %v466 = vld [vmem:[#allocation2 + $0x210] sm:$0xff]
    %v467 = vld [vmem:[#allocation2 + $0x218] sm:$0xff]
    %v468 = vld [vmem:[#allocation2 + $0x220] sm:$0xff]
    %v469 = vld [vmem:[#allocation2 + $0x228] sm:$0xff]
    %v470 = vld [vmem:[#allocation2 + $0x230] sm:$0xff]
    %v471 = vld [vmem:[#allocation2 + $0x238] sm:$0xff]
    %v472 = vld [vmem:[#allocation2 + $0x240] sm:$0xff]
    %v473 = vld [vmem:[#allocation2 + $0x248] sm:$0xff]
    %v474 = vld [vmem:[#allocation2 + $0x250] sm:$0xff]
    %v475 = vld [vmem:[#allocation2 + $0x258] sm:$0xff]
    %v476 = vld [vmem:[#allocation2 + $0x260] sm:$0xff]
    %v477 = vld [vmem:[#allocation2 + $0x268] sm:$0xff]
    %v478 = vld [vmem:[#allocation2 + $0x270] sm:$0xff]
    %v479 = vld [vmem:[#allocation2 + $0x278] sm:$0xff]
    %v480 = vld [vmem:[#allocation2 + $0x280] sm:$0xff]
    %v481 = vld [vmem:[#allocation2 + $0x288] sm:$0xff]
    %v482 = vld [vmem:[#allocation2 + $0x290] sm:$0xff]
    %v483 = vld [vmem:[#allocation2 + $0x298] sm:$0xff]
    %v484 = vld [vmem:[#allocation2 + $0x2a0] sm:$0xff]
    %v485 = vld [vmem:[#allocation2 + $0x2a8] sm:$0xff]
    %v486 = vld [vmem:[#allocation2 + $0x2b0] sm:$0xff]
    %v487 = vld [vmem:[#allocation2 + $0x2b8] sm:$0xff]
    %v488 = vld [vmem:[#allocation2 + $0x2c0] sm:$0xff]
    %v489 = vld [vmem:[#allocation2 + $0x2c8] sm:$0xff]
    %v490 = vld [vmem:[#allocation2 + $0x2d0] sm:$0xff]
    %v491 = vld [vmem:[#allocation2 + $0x2d8] sm:$0xff]
    %v492 = vld [vmem:[#allocation2 + $0x2e0] sm:$0xff]
    %v493 = vld [vmem:[#allocation2 + $0x2e8] sm:$0xff]
    %v494 = vld [vmem:[#allocation2 + $0x2f0] sm:$0xff]
    %v495 = vld [vmem:[#allocation2 + $0x2f8] sm:$0xff]
    %v496 = vld [vmem:[#allocation2 + $0x300] sm:$0xff]
    %v497 = vld [vmem:[#allocation2 + $0x308] sm:$0xff]
    %v498 = vld [vmem:[#allocation2 + $0x310] sm:$0xff]
    %v499 = vld [vmem:[#allocation2 + $0x318] sm:$0xff]
    %v500 = vld [vmem:[#allocation2 + $0x320] sm:$0xff]
    %v501 = vld [vmem:[#allocation2 + $0x328] sm:$0xff]
    %v502 = vld [vmem:[#allocation2 + $0x330] sm:$0xff]
    %v503 = vld [vmem:[#allocation2 + $0x338] sm:$0xff]
    %v504 = vld [vmem:[#allocation2 + $0x340] sm:$0xff]
    %v505 = vld [vmem:[#allocation2 + $0x348] sm:$0xff]
    %v506 = vld [vmem:[#allocation2 + $0x350] sm:$0xff]
    %v507 = vld [vmem:[#allocation2 + $0x358] sm:$0xff]
    %v508 = vld [vmem:[#allocation2 + $0x360] sm:$0xff]
    %v509 = vld [vmem:[#allocation2 + $0x368] sm:$0xff]
    %v510 = vld [vmem:[#allocation2 + $0x370] sm:$0xff]
    %v511 = vld [vmem:[#allocation2 + $0x378] sm:$0xff]
    %v512 = vld [vmem:[#allocation2 + $0x380] sm:$0xff]
    %v513 = vld [vmem:[#allocation2 + $0x388] sm:$0xff]
    %v514 = vld [vmem:[#allocation2 + $0x390] sm:$0xff]
    %v515 = vld [vmem:[#allocation2 + $0x398] sm:$0xff]
    %v516 = vld [vmem:[#allocation2 + $0x3a0] sm:$0xff]
    %v517 = vld [vmem:[#allocation2 + $0x3a8] sm:$0xff]
    %v518 = vld [vmem:[#allocation2 + $0x3b0] sm:$0xff]
    %v519 = vld [vmem:[#allocation2 + $0x3b8] sm:$0xff]
    %v520 = vld [vmem:[#allocation2 + $0x3c0] sm:$0xff]
    %v521 = vld [vmem:[#allocation2 + $0x3c8] sm:$0xff]
    %v522 = vld [vmem:[#allocation2 + $0x3d0] sm:$0xff]
    %v523 = vld [vmem:[#allocation2 + $0x3d8] sm:$0xff]
    %v524 = vld [vmem:[#allocation2 + $0x3e0] sm:$0xff]
    %v525 = vld [vmem:[#allocation2 + $0x3e8] sm:$0xff]
    %v526 = vld [vmem:[#allocation2 + $0x3f0] sm:$0xff]
    %v527 = vld [vmem:[#allocation2 + $0x3f8] sm:$0xff]
    %v528 = vunpack.c.l.s8.bf16 %v400
    %v529 = vunpack.c.l.s8.bf16 %v401
    %v530 = vunpack.c.l.s8.bf16 %v402
    %v531 = vunpack.c.l.s8.bf16 %v403
    %v532 = vunpack.c.l.s8.bf16 %v404
    %v533 = vunpack.c.l.s8.bf16 %v405
    %v534 = vunpack.c.l.s8.bf16 %v406
    %v535 = vunpack.c.l.s8.bf16 %v407
    %v536 = vunpack.c.h.s8.bf16 %v400
    %v537 = vunpack.c.h.s8.bf16 %v401
    %v538 = vunpack.c.h.s8.bf16 %v402
    %v539 = vunpack.c.h.s8.bf16 %v403
    %v540 = vunpack.c.h.s8.bf16 %v404
    %v541 = vunpack.c.h.s8.bf16 %v405
    %v542 = vunpack.c.h.s8.bf16 %v406
    %v543 = vunpack.c.h.s8.bf16 %v407
    %v544 = vunpack.c.l.s8.bf16 %v408
    %v545 = vunpack.c.l.s8.bf16 %v409
    %v546 = vunpack.c.l.s8.bf16 %v410
    %v547 = vunpack.c.l.s8.bf16 %v411
    %v548 = vunpack.c.l.s8.bf16 %v412
    %v549 = vunpack.c.l.s8.bf16 %v413
    %v550 = vunpack.c.l.s8.bf16 %v414
    %v551 = vunpack.c.l.s8.bf16 %v415
    %v552 = vunpack.c.h.s8.bf16 %v408
    %v553 = vunpack.c.h.s8.bf16 %v409
    %v554 = vunpack.c.h.s8.bf16 %v410
    %v555 = vunpack.c.h.s8.bf16 %v411
    %v556 = vunpack.c.h.s8.bf16 %v412
    %v557 = vunpack.c.h.s8.bf16 %v413
    %v558 = vunpack.c.h.s8.bf16 %v414
    %v559 = vunpack.c.h.s8.bf16 %v415
    %v560 = vunpack.c.l.s8.bf16 %v416
    %v561 = vunpack.c.l.s8.bf16 %v417
    %v562 = vunpack.c.l.s8.bf16 %v418
    %v563 = vunpack.c.l.s8.bf16 %v419
    %v564 = vunpack.c.l.s8.bf16 %v420
    %v565 = vunpack.c.l.s8.bf16 %v421
    %v566 = vunpack.c.l.s8.bf16 %v422
    %v567 = vunpack.c.l.s8.bf16 %v423
    %v568 = vunpack.c.h.s8.bf16 %v416
    %v569 = vunpack.c.h.s8.bf16 %v417
    %v570 = vunpack.c.h.s8.bf16 %v418
    %v571 = vunpack.c.h.s8.bf16 %v419
    %v572 = vunpack.c.h.s8.bf16 %v420
    %v573 = vunpack.c.h.s8.bf16 %v421
    %v574 = vunpack.c.h.s8.bf16 %v422
    %v575 = vunpack.c.h.s8.bf16 %v423
    %v576 = vunpack.c.l.s8.bf16 %v424
    %v577 = vunpack.c.l.s8.bf16 %v425
    %v578 = vunpack.c.l.s8.bf16 %v426
    %v579 = vunpack.c.l.s8.bf16 %v427
    %v580 = vunpack.c.l.s8.bf16 %v428
    %v581 = vunpack.c.l.s8.bf16 %v429
    %v582 = vunpack.c.l.s8.bf16 %v430
    %v583 = vunpack.c.l.s8.bf16 %v431
    %v584 = vunpack.c.h.s8.bf16 %v424
    %v585 = vunpack.c.h.s8.bf16 %v425
    %v586 = vunpack.c.h.s8.bf16 %v426
    %v587 = vunpack.c.h.s8.bf16 %v427
    %v588 = vunpack.c.h.s8.bf16 %v428
    %v589 = vunpack.c.h.s8.bf16 %v429
    %v590 = vunpack.c.h.s8.bf16 %v430
    %v591 = vunpack.c.h.s8.bf16 %v431
    %v592 = vunpack.c.l.s8.bf16 %v432
    %v593 = vunpack.c.l.s8.bf16 %v433
    %v594 = vunpack.c.l.s8.bf16 %v434
    %v595 = vunpack.c.l.s8.bf16 %v435
    %v596 = vunpack.c.l.s8.bf16 %v436
    %v597 = vunpack.c.l.s8.bf16 %v437
    %v598 = vunpack.c.l.s8.bf16 %v438
    %v599 = vunpack.c.l.s8.bf16 %v439
    %v600 = vunpack.c.h.s8.bf16 %v432
    %v601 = vunpack.c.h.s8.bf16 %v433
    %v602 = vunpack.c.h.s8.bf16 %v434
    %v603 = vunpack.c.h.s8.bf16 %v435
    %v604 = vunpack.c.h.s8.bf16 %v436
    %v605 = vunpack.c.h.s8.bf16 %v437
    %v606 = vunpack.c.h.s8.bf16 %v438
    %v607 = vunpack.c.h.s8.bf16 %v439
    %v608 = vunpack.c.l.s8.bf16 %v440
    %v609 = vunpack.c.l.s8.bf16 %v441
    %v610 = vunpack.c.l.s8.bf16 %v442
    %v611 = vunpack.c.l.s8.bf16 %v443
    %v612 = vunpack.c.l.s8.bf16 %v444
    %v613 = vunpack.c.l.s8.bf16 %v445
    %v614 = vunpack.c.l.s8.bf16 %v446
    %v615 = vunpack.c.l.s8.bf16 %v447
    %v616 = vunpack.c.h.s8.bf16 %v440
    %v617 = vunpack.c.h.s8.bf16 %v441
    %v618 = vunpack.c.h.s8.bf16 %v442
    %v619 = vunpack.c.h.s8.bf16 %v443
    %v620 = vunpack.c.h.s8.bf16 %v444
    %v621 = vunpack.c.h.s8.bf16 %v445
    %v622 = vunpack.c.h.s8.bf16 %v446
    %v623 = vunpack.c.h.s8.bf16 %v447
    %v624 = vunpack.c.l.s8.bf16 %v448
    %v625 = vunpack.c.l.s8.bf16 %v449
    %v626 = vunpack.c.l.s8.bf16 %v450
    %v627 = vunpack.c.l.s8.bf16 %v451
    %v628 = vunpack.c.l.s8.bf16 %v452
    %v629 = vunpack.c.l.s8.bf16 %v453
    %v630 = vunpack.c.l.s8.bf16 %v454
    %v631 = vunpack.c.l.s8.bf16 %v455
    %v632 = vunpack.c.h.s8.bf16 %v448
    %v633 = vunpack.c.h.s8.bf16 %v449
    %v634 = vunpack.c.h.s8.bf16 %v450
    %v635 = vunpack.c.h.s8.bf16 %v451
    %v636 = vunpack.c.h.s8.bf16 %v452
    %v637 = vunpack.c.h.s8.bf16 %v453
    %v638 = vunpack.c.h.s8.bf16 %v454
    %v639 = vunpack.c.h.s8.bf16 %v455
    %v640 = vunpack.c.l.s8.bf16 %v456
    %v641 = vunpack.c.l.s8.bf16 %v457
    %v642 = vunpack.c.l.s8.bf16 %v458
    %v643 = vunpack.c.l.s8.bf16 %v459
    %v644 = vunpack.c.l.s8.bf16 %v460
    %v645 = vunpack.c.l.s8.bf16 %v461
    %v646 = vunpack.c.l.s8.bf16 %v462
    %v647 = vunpack.c.l.s8.bf16 %v463
    %v648 = vunpack.c.h.s8.bf16 %v456
    %v649 = vunpack.c.h.s8.bf16 %v457
    %v650 = vunpack.c.h.s8.bf16 %v458
    %v651 = vunpack.c.h.s8.bf16 %v459
    %v652 = vunpack.c.h.s8.bf16 %v460
    %v653 = vunpack.c.h.s8.bf16 %v461
    %v654 = vunpack.c.h.s8.bf16 %v462
    %v655 = vunpack.c.h.s8.bf16 %v463
    %v656 = vunpack.c.l.s8.bf16 %v464
    %v657 = vunpack.c.l.s8.bf16 %v465
    %v658 = vunpack.c.l.s8.bf16 %v466
    %v659 = vunpack.c.l.s8.bf16 %v467
    %v660 = vunpack.c.l.s8.bf16 %v468
    %v661 = vunpack.c.l.s8.bf16 %v469
    %v662 = vunpack.c.l.s8.bf16 %v470
    %v663 = vunpack.c.l.s8.bf16 %v471
    %v664 = vunpack.c.h.s8.bf16 %v464
    %v665 = vunpack.c.h.s8.bf16 %v465
    %v666 = vunpack.c.h.s8.bf16 %v466
    %v667 = vunpack.c.h.s8.bf16 %v467
    %v668 = vunpack.c.h.s8.bf16 %v468
    %v669 = vunpack.c.h.s8.bf16 %v469
    %v670 = vunpack.c.h.s8.bf16 %v470
    %v671 = vunpack.c.h.s8.bf16 %v471
    %v672 = vunpack.c.l.s8.bf16 %v472
    %v673 = vunpack.c.l.s8.bf16 %v473
    %v674 = vunpack.c.l.s8.bf16 %v474
    %v675 = vunpack.c.l.s8.bf16 %v475
    %v676 = vunpack.c.l.s8.bf16 %v476
    %v677 = vunpack.c.l.s8.bf16 %v477
    %v678 = vunpack.c.l.s8.bf16 %v478
    %v679 = vunpack.c.l.s8.bf16 %v479
    %v680 = vunpack.c.h.s8.bf16 %v472
    %v681 = vunpack.c.h.s8.bf16 %v473
    %v682 = vunpack.c.h.s8.bf16 %v474
    %v683 = vunpack.c.h.s8.bf16 %v475
    %v684 = vunpack.c.h.s8.bf16 %v476
    %v685 = vunpack.c.h.s8.bf16 %v477
    %v686 = vunpack.c.h.s8.bf16 %v478
    %v687 = vunpack.c.h.s8.bf16 %v479
    %v688 = vunpack.c.l.s8.bf16 %v480
    %v689 = vunpack.c.l.s8.bf16 %v481
    %v690 = vunpack.c.l.s8.bf16 %v482
    %v691 = vunpack.c.l.s8.bf16 %v483
    %v692 = vunpack.c.l.s8.bf16 %v484
    %v693 = vunpack.c.l.s8.bf16 %v485
    %v694 = vunpack.c.l.s8.bf16 %v486
    %v695 = vunpack.c.l.s8.bf16 %v487
    %v696 = vunpack.c.h.s8.bf16 %v480
    %v697 = vunpack.c.h.s8.bf16 %v481
    %v698 = vunpack.c.h.s8.bf16 %v482
    %v699 = vunpack.c.h.s8.bf16 %v483
    %v700 = vunpack.c.h.s8.bf16 %v484
    %v701 = vunpack.c.h.s8.bf16 %v485
    %v702 = vunpack.c.h.s8.bf16 %v486
    %v703 = vunpack.c.h.s8.bf16 %v487
    %v704 = vunpack.c.l.s8.bf16 %v488
    %v705 = vunpack.c.l.s8.bf16 %v489
    %v706 = vunpack.c.l.s8.bf16 %v490
    %v707 = vunpack.c.l.s8.bf16 %v491
    %v708 = vunpack.c.l.s8.bf16 %v492
    %v709 = vunpack.c.l.s8.bf16 %v493
    %v710 = vunpack.c.l.s8.bf16 %v494
    %v711 = vunpack.c.l.s8.bf16 %v495
    %v712 = vunpack.c.h.s8.bf16 %v488
    %v713 = vunpack.c.h.s8.bf16 %v489
    %v714 = vunpack.c.h.s8.bf16 %v490
    %v715 = vunpack.c.h.s8.bf16 %v491
    %v716 = vunpack.c.h.s8.bf16 %v492
    %v717 = vunpack.c.h.s8.bf16 %v493
    %v718 = vunpack.c.h.s8.bf16 %v494
    %v719 = vunpack.c.h.s8.bf16 %v495
    %v720 = vunpack.c.l.s8.bf16 %v496
    %v721 = vunpack.c.l.s8.bf16 %v497
    %v722 = vunpack.c.l.s8.bf16 %v498
    %v723 = vunpack.c.l.s8.bf16 %v499
    %v724 = vunpack.c.l.s8.bf16 %v500
    %v725 = vunpack.c.l.s8.bf16 %v501
    %v726 = vunpack.c.l.s8.bf16 %v502
    %v727 = vunpack.c.l.s8.bf16 %v503
    %v728 = vunpack.c.h.s8.bf16 %v496
    %v729 = vunpack.c.h.s8.bf16 %v497
    %v730 = vunpack.c.h.s8.bf16 %v498
    %v731 = vunpack.c.h.s8.bf16 %v499
    %v732 = vunpack.c.h.s8.bf16 %v500
    %v733 = vunpack.c.h.s8.bf16 %v501
    %v734 = vunpack.c.h.s8.bf16 %v502
    %v735 = vunpack.c.h.s8.bf16 %v503
    %v736 = vunpack.c.l.s8.bf16 %v504
    %v737 = vunpack.c.l.s8.bf16 %v505
    %v738 = vunpack.c.l.s8.bf16 %v506
    %v739 = vunpack.c.l.s8.bf16 %v507
    %v740 = vunpack.c.l.s8.bf16 %v508
    %v741 = vunpack.c.l.s8.bf16 %v509
    %v742 = vunpack.c.l.s8.bf16 %v510
    %v743 = vunpack.c.l.s8.bf16 %v511
    %v744 = vunpack.c.h.s8.bf16 %v504
    %v745 = vunpack.c.h.s8.bf16 %v505
    %v746 = vunpack.c.h.s8.bf16 %v506
    %v747 = vunpack.c.h.s8.bf16 %v507
    %v748 = vunpack.c.h.s8.bf16 %v508
    %v749 = vunpack.c.h.s8.bf16 %v509
    %v750 = vunpack.c.h.s8.bf16 %v510
    %v751 = vunpack.c.h.s8.bf16 %v511
    %v752 = vunpack.c.l.s8.bf16 %v512
    %v753 = vunpack.c.l.s8.bf16 %v513
    %v754 = vunpack.c.l.s8.bf16 %v514
    %v755 = vunpack.c.l.s8.bf16 %v515
    %v756 = vunpack.c.l.s8.bf16 %v516
    %v757 = vunpack.c.l.s8.bf16 %v517
    %v758 = vunpack.c.l.s8.bf16 %v518
    %v759 = vunpack.c.l.s8.bf16 %v519
    %v760 = vunpack.c.h.s8.bf16 %v512
    %v761 = vunpack.c.h.s8.bf16 %v513
    %v762 = vunpack.c.h.s8.bf16 %v514
    %v763 = vunpack.c.h.s8.bf16 %v515
    %v764 = vunpack.c.h.s8.bf16 %v516
    %v765 = vunpack.c.h.s8.bf16 %v517
    %v766 = vunpack.c.h.s8.bf16 %v518
    %v767 = vunpack.c.h.s8.bf16 %v519
    %v768 = vunpack.c.l.s8.bf16 %v520
    %v769 = vunpack.c.l.s8.bf16 %v521
    %v770 = vunpack.c.l.s8.bf16 %v522
    %v771 = vunpack.c.l.s8.bf16 %v523
    %v772 = vunpack.c.l.s8.bf16 %v524
    %v773 = vunpack.c.l.s8.bf16 %v525
    %v774 = vunpack.c.l.s8.bf16 %v526
    %v775 = vunpack.c.l.s8.bf16 %v527
    %v776 = vunpack.c.h.s8.bf16 %v520
    %v777 = vunpack.c.h.s8.bf16 %v521
    %v778 = vunpack.c.h.s8.bf16 %v522
    %v779 = vunpack.c.h.s8.bf16 %v523
    %v780 = vunpack.c.h.s8.bf16 %v524
    %v781 = vunpack.c.h.s8.bf16 %v525
    %v782 = vunpack.c.h.s8.bf16 %v526
    %v783 = vunpack.c.h.s8.bf16 %v527
    %784 = vmatprep.subr.bf16.mxu0 %v529
    %785 = vmatpush1.bf16.msra.mxu0 %v528
    %786 = vmatprep.subr.bf16.mxu0 %v537
    %787 = vmatpush1.bf16.msra.mxu0 %v536
    %788 = vmatprep.subr.bf16.mxu0 %v545
    %789 = vmatpush1.bf16.msra.mxu0 %v544
    %790 = vmatprep.subr.bf16.mxu0 %v553
    %791 = vmatpush1.bf16.msra.mxu0 %v552
    %792 = vmatprep.subr.bf16.mxu0 %v561
    %793 = vmatpush1.bf16.msra.mxu0 %v560
    %794 = vmatprep.subr.bf16.mxu0 %v569
    %795 = vmatpush1.bf16.msra.mxu0 %v568
    %796 = vmatprep.subr.bf16.mxu0 %v577
    %797 = vmatpush1.bf16.msra.mxu0 %v576
    %798 = vmatprep.subr.bf16.mxu0 %v585
    %799 = vmatpush1.bf16.msra.mxu0 %v584
    %800 = vmatprep.subr.bf16.mxu0 %v593
    %801 = vmatpush1.bf16.msra.mxu0 %v592
    %802 = vmatprep.subr.bf16.mxu0 %v601
    %803 = vmatpush1.bf16.msra.mxu0 %v600
    %804 = vmatprep.subr.bf16.mxu0 %v609
    %805 = vmatpush1.bf16.msra.mxu0 %v608
    %806 = vmatprep.subr.bf16.mxu0 %v617
    %807 = vmatpush1.bf16.msra.mxu0 %v616
    %808 = vmatprep.subr.bf16.mxu0 %v625
    %809 = vmatpush1.bf16.msra.mxu0 %v624
    %810 = vmatprep.subr.bf16.mxu0 %v633
    %811 = vmatpush1.bf16.msra.mxu0 %v632
    %812 = vmatprep.subr.bf16.mxu0 %v641
    %813 = vmatpush1.bf16.msra.mxu0 %v640
    %814 = vmatprep.subr.bf16.mxu0 %v649
    %815 = vmatpush1.bf16.msra.mxu0 %v648
    %816 = vmatprep.mubr.bf16.mxu0 %v397
    %817 = vmatmul.mubr.bf16.gmra.mrb[0].mxu0 %v396
    %v818 = vpop.f32.mrb[0].mxu0
    %v819 = vadd.f32 0.0, %v818
    %v820 = vpop.f32.mrb[0].mxu0
    %v821 = vadd.f32 0.0, %v820
    %v822 = vpop.f32.mrb[0].mxu0
    %v823 = vpop.f32.mrb[0].mxu0
    %824 = vdwg.mxu0
    %825 = vmatprep.subr.bf16.mxu0 %v657
    %826 = vmatpush1.bf16.msra.mxu0 %v656
    %827 = vmatprep.subr.bf16.mxu0 %v665
    %828 = vmatpush1.bf16.msra.mxu0 %v664
    %829 = vmatprep.subr.bf16.mxu0 %v673
    %830 = vmatpush1.bf16.msra.mxu0 %v672
    %831 = vmatprep.subr.bf16.mxu0 %v681
    %832 = vmatpush1.bf16.msra.mxu0 %v680
    %833 = vmatprep.subr.bf16.mxu0 %v689
    %834 = vmatpush1.bf16.msra.mxu0 %v688
    %835 = vmatprep.subr.bf16.mxu0 %v697
    %836 = vmatpush1.bf16.msra.mxu0 %v696
    %837 = vmatprep.subr.bf16.mxu0 %v705
    %838 = vmatpush1.bf16.msra.mxu0 %v704
    %839 = vmatprep.subr.bf16.mxu0 %v713
    %840 = vmatpush1.bf16.msra.mxu0 %v712
    %841 = vmatprep.subr.bf16.mxu0 %v721
    %842 = vmatpush1.bf16.msra.mxu0 %v720
    %843 = vmatprep.subr.bf16.mxu0 %v729
    %844 = vmatpush1.bf16.msra.mxu0 %v728
    %845 = vmatprep.subr.bf16.mxu0 %v737
    %846 = vmatpush1.bf16.msra.mxu0 %v736
    %847 = vmatprep.subr.bf16.mxu0 %v745
    %848 = vmatpush1.bf16.msra.mxu0 %v744
    %849 = vmatprep.subr.bf16.mxu0 %v753
    %850 = vmatpush1.bf16.msra.mxu0 %v752
    %851 = vmatprep.subr.bf16.mxu0 %v761
    %852 = vmatpush1.bf16.msra.mxu0 %v760
    %853 = vmatprep.subr.bf16.mxu0 %v769
    %854 = vmatpush1.bf16.msra.mxu0 %v768
    %855 = vmatprep.subr.bf16.mxu0 %v777
    %856 = vmatpush1.bf16.msra.mxu0 %v776
    %857 = vmatprep.mubr.bf16.mxu0 %v399
    %858 = vmatmul.mubr.bf16.gmra.mrb[0].mxu0 %v398
    %v859 = vpop.f32.mrb[0].mxu0
    %v860 = vadd.f32 %v819, %v859
    %v861 = vpop.f32.mrb[0].mxu0
    %v862 = vadd.f32 %v821, %v861
    %v863 = vpop.f32.mrb[0].mxu0
    %v864 = vpop.f32.mrb[0].mxu0
    %865 = vdwg.mxu0
    %866 = vmatprep.subr.bf16.mxu0 %v531
    %867 = vmatpush1.bf16.msra.mxu0 %v530
    %868 = vmatprep.subr.bf16.mxu0 %v539
    %869 = vmatpush1.bf16.msra.mxu0 %v538
    %870 = vmatprep.subr.bf16.mxu0 %v547
    %871 = vmatpush1.bf16.msra.mxu0 %v546
    %872 = vmatprep.subr.bf16.mxu0 %v555
    %873 = vmatpush1.bf16.msra.mxu0 %v554
    %874 = vmatprep.subr.bf16.mxu0 %v563
    %875 = vmatpush1.bf16.msra.mxu0 %v562
    %876 = vmatprep.subr.bf16.mxu0 %v571
    %877 = vmatpush1.bf16.msra.mxu0 %v570
    %878 = vmatprep.subr.bf16.mxu0 %v579
    %879 = vmatpush1.bf16.msra.mxu0 %v578
    %880 = vmatprep.subr.bf16.mxu0 %v587
    %881 = vmatpush1.bf16.msra.mxu0 %v586
    %882 = vmatprep.subr.bf16.mxu0 %v595
    %883 = vmatpush1.bf16.msra.mxu0 %v594
    %884 = vmatprep.subr.bf16.mxu0 %v603
    %885 = vmatpush1.bf16.msra.mxu0 %v602
    %886 = vmatprep.subr.bf16.mxu0 %v611
    %887 = vmatpush1.bf16.msra.mxu0 %v610
    %888 = vmatprep.subr.bf16.mxu0 %v619
    %889 = vmatpush1.bf16.msra.mxu0 %v618
    %890 = vmatprep.subr.bf16.mxu0 %v627
    %891 = vmatpush1.bf16.msra.mxu0 %v626
    %892 = vmatprep.subr.bf16.mxu0 %v635
    %893 = vmatpush1.bf16.msra.mxu0 %v634
    %894 = vmatprep.subr.bf16.mxu0 %v643
    %895 = vmatpush1.bf16.msra.mxu0 %v642
    %896 = vmatprep.subr.bf16.mxu0 %v651
    %897 = vmatpush1.bf16.msra.mxu0 %v650
    %898 = vmatprep.mubr.bf16.mxu0 %v397
    %899 = vmatmul.mubr.bf16.gmra.mrb[0].mxu0 %v396
    %v900 = vpop.f32.mrb[0].mxu0
    %v901 = vadd.f32 0.0, %v900
    %v902 = vpop.f32.mrb[0].mxu0
    %v903 = vadd.f32 0.0, %v902
    %v904 = vpop.f32.mrb[0].mxu0
    %v905 = vpop.f32.mrb[0].mxu0
    %906 = vdwg.mxu0
    %907 = vmatprep.subr.bf16.mxu0 %v659
    %908 = vmatpush1.bf16.msra.mxu0 %v658
    %909 = vmatprep.subr.bf16.mxu0 %v667
    %910 = vmatpush1.bf16.msra.mxu0 %v666
    %911 = vmatprep.subr.bf16.mxu0 %v675
    %912 = vmatpush1.bf16.msra.mxu0 %v674
    %913 = vmatprep.subr.bf16.mxu0 %v683
    %914 = vmatpush1.bf16.msra.mxu0 %v682
    %915 = vmatprep.subr.bf16.mxu0 %v691
    %916 = vmatpush1.bf16.msra.mxu0 %v690
    %917 = vmatprep.subr.bf16.mxu0 %v699
    %918 = vmatpush1.bf16.msra.mxu0 %v698
    %919 = vmatprep.subr.bf16.mxu0 %v707
    %920 = vmatpush1.bf16.msra.mxu0 %v706
    %921 = vmatprep.subr.bf16.mxu0 %v715
    %922 = vmatpush1.bf16.msra.mxu0 %v714
    %923 = vmatprep.subr.bf16.mxu0 %v723
    %924 = vmatpush1.bf16.msra.mxu0 %v722
    %925 = vmatprep.subr.bf16.mxu0 %v731
    %926 = vmatpush1.bf16.msra.mxu0 %v730
    %927 = vmatprep.subr.bf16.mxu0 %v739
    %928 = vmatpush1.bf16.msra.mxu0 %v738
    %929 = vmatprep.subr.bf16.mxu0 %v747
    %930 = vmatpush1.bf16.msra.mxu0 %v746
    %931 = vmatprep.subr.bf16.mxu0 %v755
    %932 = vmatpush1.bf16.msra.mxu0 %v754
    %933 = vmatprep.subr.bf16.mxu0 %v763
    %934 = vmatpush1.bf16.msra.mxu0 %v762
    %935 = vmatprep.subr.bf16.mxu0 %v771
    %936 = vmatpush1.bf16.msra.mxu0 %v770
    %937 = vmatprep.subr.bf16.mxu0 %v779
    %938 = vmatpush1.bf16.msra.mxu0 %v778
    %939 = vmatprep.mubr.bf16.mxu0 %v399
    %940 = vmatmul.mubr.bf16.gmra.mrb[0].mxu0 %v398
    %v941 = vpop.f32.mrb[0].mxu0
    %v942 = vadd.f32 %v901, %v941
    %v943 = vpop.f32.mrb[0].mxu0
    %v944 = vadd.f32 %v903, %v943
    %v945 = vpop.f32.mrb[0].mxu0
    %v946 = vpop.f32.mrb[0].mxu0
    %947 = vdwg.mxu0
    %948 = vmatprep.subr.bf16.mxu0 %v533
    %949 = vmatpush1.bf16.msra.mxu0 %v532
    %950 = vmatprep.subr.bf16.mxu0 %v541
    %951 = vmatpush1.bf16.msra.mxu0 %v540
    %952 = vmatprep.subr.bf16.mxu0 %v549
    %953 = vmatpush1.bf16.msra.mxu0 %v548
    %954 = vmatprep.subr.bf16.mxu0 %v557
    %955 = vmatpush1.bf16.msra.mxu0 %v556
    %956 = vmatprep.subr.bf16.mxu0 %v565
    %957 = vmatpush1.bf16.msra.mxu0 %v564
    %958 = vmatprep.subr.bf16.mxu0 %v573
    %959 = vmatpush1.bf16.msra.mxu0 %v572
    %960 = vmatprep.subr.bf16.mxu0 %v581
    %961 = vmatpush1.bf16.msra.mxu0 %v580
    %962 = vmatprep.subr.bf16.mxu0 %v589
    %963 = vmatpush1.bf16.msra.mxu0 %v588
    %964 = vmatprep.subr.bf16.mxu0 %v597
    %965 = vmatpush1.bf16.msra.mxu0 %v596
    %966 = vmatprep.subr.bf16.mxu0 %v605
    %967 = vmatpush1.bf16.msra.mxu0 %v604
    %968 = vmatprep.subr.bf16.mxu0 %v613
    %969 = vmatpush1.bf16.msra.mxu0 %v612
    %970 = vmatprep.subr.bf16.mxu0 %v621
    %971 = vmatpush1.bf16.msra.mxu0 %v620
    %972 = vmatprep.subr.bf16.mxu0 %v629
    %973 = vmatpush1.bf16.msra.mxu0 %v628
    %974 = vmatprep.subr.bf16.mxu0 %v637
    %975 = vmatpush1.bf16.msra.mxu0 %v636
    %976 = vmatprep.subr.bf16.mxu0 %v645
    %977 = vmatpush1.bf16.msra.mxu0 %v644
    %978 = vmatprep.subr.bf16.mxu0 %v653
    %979 = vmatpush1.bf16.msra.mxu0 %v652
    %980 = vmatprep.mubr.bf16.mxu0 %v397
    %981 = vmatmul.mubr.bf16.gmra.mrb[0].mxu0 %v396
    %v982 = vpop.f32.mrb[0].mxu0
    %v983 = vadd.f32 0.0, %v982
    %v984 = vpop.f32.mrb[0].mxu0
    %v985 = vadd.f32 0.0, %v984
    %v986 = vpop.f32.mrb[0].mxu0
    %v987 = vpop.f32.mrb[0].mxu0
    %988 = vdwg.mxu0
    %989 = vmatprep.subr.bf16.mxu0 %v661
    %990 = vmatpush1.bf16.msra.mxu0 %v660
    %991 = vmatprep.subr.bf16.mxu0 %v669
    %992 = vmatpush1.bf16.msra.mxu0 %v668
    %993 = vmatprep.subr.bf16.mxu0 %v677
    %994 = vmatpush1.bf16.msra.mxu0 %v676
    %995 = vmatprep.subr.bf16.mxu0 %v685
    %996 = vmatpush1.bf16.msra.mxu0 %v684
    %997 = vmatprep.subr.bf16.mxu0 %v693
    %998 = vmatpush1.bf16.msra.mxu0 %v692
    %999 = vmatprep.subr.bf16.mxu0 %v701
    %1000 = vmatpush1.bf16.msra.mxu0 %v700
    %1001 = vmatprep.subr.bf16.mxu0 %v709
    %1002 = vmatpush1.bf16.msra.mxu0 %v708
    %1003 = vmatprep.subr.bf16.mxu0 %v717
    %1004 = vmatpush1.bf16.msra.mxu0 %v716
    %1005 = vmatprep.subr.bf16.mxu0 %v725
    %1006 = vmatpush1.bf16.msra.mxu0 %v724
    %1007 = vmatprep.subr.bf16.mxu0 %v733
    %1008 = vmatpush1.bf16.msra.mxu0 %v732
    %1009 = vmatprep.subr.bf16.mxu0 %v741
    %1010 = vmatpush1.bf16.msra.mxu0 %v740
    %1011 = vmatprep.subr.bf16.mxu0 %v749
    %1012 = vmatpush1.bf16.msra.mxu0 %v748
    %1013 = vmatprep.subr.bf16.mxu0 %v757
    %1014 = vmatpush1.bf16.msra.mxu0 %v756
    %1015 = vmatprep.subr.bf16.mxu0 %v765
    %1016 = vmatpush1.bf16.msra.mxu0 %v764
    %1017 = vmatprep.subr.bf16.mxu0 %v773
    %1018 = vmatpush1.bf16.msra.mxu0 %v772
    %1019 = vmatprep.subr.bf16.mxu0 %v781
    %1020 = vmatpush1.bf16.msra.mxu0 %v780
    %1021 = vmatprep.mubr.bf16.mxu0 %v399
    %1022 = vmatmul.mubr.bf16.gmra.mrb[0].mxu0 %v398
    %v1023 = vpop.f32.mrb[0].mxu0
    %v1024 = vadd.f32 %v983, %v1023
    %v1025 = vpop.f32.mrb[0].mxu0
    %v1026 = vadd.f32 %v985, %v1025
    %v1027 = vpop.f32.mrb[0].mxu0
    %v1028 = vpop.f32.mrb[0].mxu0
    %1029 = vdwg.mxu0
    %1030 = vmatprep.subr.bf16.mxu0 %v535
    %1031 = vmatpush1.bf16.msra.mxu0 %v534
    %1032 = vmatprep.subr.bf16.mxu0 %v543
    %1033 = vmatpush1.bf16.msra.mxu0 %v542
    %1034 = vmatprep.subr.bf16.mxu0 %v551
    %1035 = vmatpush1.bf16.msra.mxu0 %v550
    %1036 = vmatprep.subr.bf16.mxu0 %v559
    %1037 = vmatpush1.bf16.msra.mxu0 %v558
    %1038 = vmatprep.subr.bf16.mxu0 %v567
    %1039 = vmatpush1.bf16.msra.mxu0 %v566
    %1040 = vmatprep.subr.bf16.mxu0 %v575
    %1041 = vmatpush1.bf16.msra.mxu0 %v574
    %1042 = vmatprep.subr.bf16.mxu0 %v583
    %1043 = vmatpush1.bf16.msra.mxu0 %v582
    %1044 = vmatprep.subr.bf16.mxu0 %v591
    %1045 = vmatpush1.bf16.msra.mxu0 %v590
    %1046 = vmatprep.subr.bf16.mxu0 %v599
    %1047 = vmatpush1.bf16.msra.mxu0 %v598
    %1048 = vmatprep.subr.bf16.mxu0 %v607
    %1049 = vmatpush1.bf16.msra.mxu0 %v606
    %1050 = vmatprep.subr.bf16.mxu0 %v615
    %1051 = vmatpush1.bf16.msra.mxu0 %v614
    %1052 = vmatprep.subr.bf16.mxu0 %v623
    %1053 = vmatpush1.bf16.msra.mxu0 %v622
    %1054 = vmatprep.subr.bf16.mxu0 %v631
    %1055 = vmatpush1.bf16.msra.mxu0 %v630
    %1056 = vmatprep.subr.bf16.mxu0 %v639
    %1057 = vmatpush1.bf16.msra.mxu0 %v638
    %1058 = vmatprep.subr.bf16.mxu0 %v647
    %1059 = vmatpush1.bf16.msra.mxu0 %v646
    %1060 = vmatprep.subr.bf16.mxu0 %v655
    %1061 = vmatpush1.bf16.msra.mxu0 %v654
    %1062 = vmatprep.mubr.bf16.mxu0 %v397
    %1063 = vmatmul.mubr.bf16.gmra.mrb[0].mxu0 %v396
    %v1064 = vpop.f32.mrb[0].mxu0
    %v1065 = vadd.f32 0.0, %v1064
    %v1066 = vpop.f32.mrb[0].mxu0
    %v1067 = vadd.f32 0.0, %v1066
    %v1068 = vpop.f32.mrb[0].mxu0
    %v1069 = vpop.f32.mrb[0].mxu0
    %1070 = vdwg.mxu0
    %1071 = vmatprep.subr.bf16.mxu0 %v663
    %1072 = vmatpush1.bf16.msra.mxu0 %v662
    %1073 = vmatprep.subr.bf16.mxu0 %v671
    %1074 = vmatpush1.bf16.msra.mxu0 %v670
    %1075 = vmatprep.subr.bf16.mxu0 %v679
    %1076 = vmatpush1.bf16.msra.mxu0 %v678
    %1077 = vmatprep.subr.bf16.mxu0 %v687
    %1078 = vmatpush1.bf16.msra.mxu0 %v686
    %1079 = vmatprep.subr.bf16.mxu0 %v695
    %1080 = vmatpush1.bf16.msra.mxu0 %v694
    %1081 = vmatprep.subr.bf16.mxu0 %v703
    %1082 = vmatpush1.bf16.msra.mxu0 %v702
    %1083 = vmatprep.subr.bf16.mxu0 %v711
    %1084 = vmatpush1.bf16.msra.mxu0 %v710
    %1085 = vmatprep.subr.bf16.mxu0 %v719
    %1086 = vmatpush1.bf16.msra.mxu0 %v718
    %1087 = vmatprep.subr.bf16.mxu0 %v727
    %1088 = vmatpush1.bf16.msra.mxu0 %v726
    %1089 = vmatprep.subr.bf16.mxu0 %v735
    %1090 = vmatpush1.bf16.msra.mxu0 %v734
    %1091 = vmatprep.subr.bf16.mxu0 %v743
    %1092 = vmatpush1.bf16.msra.mxu0 %v742
    %1093 = vmatprep.subr.bf16.mxu0 %v751
    %1094 = vmatpush1.bf16.msra.mxu0 %v750
    %1095 = vmatprep.subr.bf16.mxu0 %v759
    %1096 = vmatpush1.bf16.msra.mxu0 %v758
    %1097 = vmatprep.subr.bf16.mxu0 %v767
    %1098 = vmatpush1.bf16.msra.mxu0 %v766
    %1099 = vmatprep.subr.bf16.mxu0 %v775
    %1100 = vmatpush1.bf16.msra.mxu0 %v774
    %1101 = vmatprep.subr.bf16.mxu0 %v783
    %1102 = vmatpush1.bf16.msra.mxu0 %v782
    %1103 = vmatprep.mubr.bf16.mxu0 %v399
    %1104 = vmatmul.mubr.bf16.gmra.mrb[0].mxu0 %v398
    %v1105 = vpop.f32.mrb[0].mxu0
    %v1106 = vadd.f32 %v1065, %v1105
    %v1107 = vpop.f32.mrb[0].mxu0
    %v1108 = vadd.f32 %v1067, %v1107
    %v1109 = vpop.f32.mrb[0].mxu0
    %v1110 = vpop.f32.mrb[0].mxu0
    %1111 = vdwg.mxu0
    %v1113 = vlaneseq
    %v1114 = vshrl.u32 %v1113, 7
    %v1115 = vsub.s32 0, %v1114
    %v1116 = vrot.slane %v84, %v1115
    %v1117 = vlaneseq
    %v1118 = vshrl.u32 %v1117, 7
    %v1119 = vsub.s32 1, %v1118
    %v1120 = vrot.slane %v84, %v1119
    %v1121 = vlaneseq
    %v1122 = vshrl.u32 %v1121, 7
    %v1123 = vsub.s32 2, %v1122
    %v1124 = vrot.slane %v84, %v1123
    %v1125 = vlaneseq
    %v1126 = vshrl.u32 %v1125, 7
    %v1127 = vsub.s32 3, %v1126
    %v1128 = vrot.slane %v84, %v1127
    %v1129 = vlaneseq
    %v1130 = vshrl.u32 %v1129, 7
    %v1131 = vsub.s32 4, %v1130
    %v1132 = vrot.slane %v84, %v1131
    %v1133 = vlaneseq
    %v1134 = vshrl.u32 %v1133, 7
    %v1135 = vsub.s32 5, %v1134
    %v1136 = vrot.slane %v84, %v1135
    %v1137 = vlaneseq
    %v1138 = vshrl.u32 %v1137, 7
    %v1139 = vsub.s32 6, %v1138
    %v1140 = vrot.slane %v84, %v1139
    %v1141 = vlaneseq
    %v1142 = vshrl.u32 %v1141, 7
    %v1143 = vsub.s32 7, %v1142
    %v1144 = vrot.slane %v84, %v1143
    %v1153 = vmul.f32 %v860, %v1116
    %v1154 = vmul.f32 %v862, %v1120
    %v1155 = vmul.f32 %v942, %v1124
    %v1156 = vmul.f32 %v944, %v1128
    %v1157 = vmul.f32 %v1024, %v1132
    %v1158 = vmul.f32 %v1026, %v1136
    %v1159 = vmul.f32 %v1106, %v1140
    %v1160 = vmul.f32 %v1108, %v1144
    %v1162 = vlaneseq
    %v1163 = vshrl.u32 %v1162, 7
    %v1164 = vsub.s32 0, %v1163
    %v1165 = vrot.slane %v85, %v1164
    %v1166 = vlaneseq
    %v1167 = vshrl.u32 %v1166, 7
    %v1168 = vsub.s32 1, %v1167
    %v1169 = vrot.slane %v85, %v1168
    %v1170 = vlaneseq
    %v1171 = vshrl.u32 %v1170, 7
    %v1172 = vsub.s32 2, %v1171
    %v1173 = vrot.slane %v85, %v1172
    %v1174 = vlaneseq
    %v1175 = vshrl.u32 %v1174, 7
    %v1176 = vsub.s32 3, %v1175
    %v1177 = vrot.slane %v85, %v1176
    %v1178 = vlaneseq
    %v1179 = vshrl.u32 %v1178, 7
    %v1180 = vsub.s32 4, %v1179
    %v1181 = vrot.slane %v85, %v1180
    %v1182 = vlaneseq
    %v1183 = vshrl.u32 %v1182, 7
    %v1184 = vsub.s32 5, %v1183
    %v1185 = vrot.slane %v85, %v1184
    %v1186 = vlaneseq
    %v1187 = vshrl.u32 %v1186, 7
    %v1188 = vsub.s32 6, %v1187
    %v1189 = vrot.slane %v85, %v1188
    %v1190 = vlaneseq
    %v1191 = vshrl.u32 %v1190, 7
    %v1192 = vsub.s32 7, %v1191
    %v1193 = vrot.slane %v85, %v1192
    %v1202 = vadd.f32 %v1153, %v1165
    %v1203 = vadd.f32 %v1154, %v1169
    %v1204 = vadd.f32 %v1155, %v1173
    %v1205 = vadd.f32 %v1156, %v1177
    %v1206 = vadd.f32 %v1157, %v1181
    %v1207 = vadd.f32 %v1158, %v1185
    %v1208 = vadd.f32 %v1159, %v1189
    %v1209 = vadd.f32 %v1160, %v1193
    %v1218 = vcombine.low %v1202, %v1203
    %v1219 = vcombine.low %v1204, %v1205
    %v1221 = vunpack.c.l.s4 1983009808
    %v1222 = vunpack.c.0.s8 %v1221
    %v1223 = vlaneseq
    %v1224 = vshrl.u32 %v1223, 7
    %v1225 = vsub.s32 %v1222, %v1224
    %v1226 = vrot.slane %v1218, %v1225
    %v1228 = vunpack.c.l.s4 1983009808
    %v1229 = vunpack.c.0.s8 %v1228
    %v1230 = vlaneseq
    %v1231 = vshrl.u32 %v1230, 7
    %v1232 = vsub.s32 %v1229, %v1231
    %v1233 = vrot.slane %v1219, %v1232
    %v1234 = vcombine.low %v1226, %v1233
    %v1235 = vcombine.low %v1206, %v1207
    %v1236 = vcombine.low %v1208, %v1209
    %v1238 = vunpack.c.l.s4 1983009808
    %v1239 = vunpack.c.0.s8 %v1238
    %v1240 = vlaneseq
    %v1241 = vshrl.u32 %v1240, 7
    %v1242 = vsub.s32 %v1239, %v1241
    %v1243 = vrot.slane %v1235, %v1242
    %v1245 = vunpack.c.l.s4 1983009808
    %v1246 = vunpack.c.0.s8 %v1245
    %v1247 = vlaneseq
    %v1248 = vshrl.u32 %v1247, 7
    %v1249 = vsub.s32 %v1246, %v1248
    %v1250 = vrot.slane %v1236, %v1249
    %v1251 = vcombine.low %v1243, %v1250
    %1254 = vst [vmem:[%s5] sm:$0xff] %v1234
    %1255 = vst [vmem:[%s5 + $0x8] sm:$0xff] %v1251
    // Predicated region
    $region38: #{decoder_forward.1} parent=1 // pred_check
      _
    $region39: #{decoder_forward.1} parent=1 // pred_check_branch
      %1257 = sbr.rel (0) target = $region41
    $region40: #{decoder_forward.1} parent=1 // pred_region
      _
    $region41: #{decoder_forward.1} parent=1 // pred_fallthru
      _
    // Predicated region
    $region42: #{decoder_forward.1} parent=1 // pred_check
      _
    $region43: #{decoder_forward.1} parent=1 // pred_check_branch
      %1259 = sbr.rel (0) target = $region45
    $region44: #{decoder_forward.1} parent=1 // pred_region
      _
    $region45: #{decoder_forward.1} parent=1 // pred_fallthru
      _
    %1260 = vsyncpa [#allocation5], 1
    %1261 = vsyncpa [#allocation7], 1
    %1262 = vsyncpa [#allocation10], 1
  %1263 = vsyncmov [#allocation3]
  %s1264 = vpop.sfrf %1263
  %p1265 = scmp.eq.s32.totalorder %s1264, 0
  %p1266 = pneg %p1265
  %1268 = shalt.err (%p1266)

</llo_original>
